<compile_context>
chip_gen: v7x
topology: tpu7x:2x2x1
jax: 0.10.0
libtpu: 0.0.40
codegen_flags: <defaults>
</compile_context>

<pallas_src>
import math

import numpy as np
import jax
import jax.numpy as jnp
from jax.experimental import pallas as pl
from jax.experimental.pallas import tpu as pltpu

_LANE = 128
_OUT_PAD = 256        # pad lane-dense output dims to >= 256-wide tiles
_MAX_ROW_TILE = 512
_MAX_COL_TILE = 512


def _round_up(n, m):
    return ((n + m - 1) // m) * m


def _vmem_limit_bytes():
    """~48 MiB on v7x (64 MiB physical), 96 MiB on v5e/v6e (128 MiB)."""
    try:
        cap = pltpu.get_tpu_info().vmem_capacity_bytes
    except Exception:
        cap = 64 * 1024 * 1024  # conservative (v7x-sized) fallback
    return int(min(cap - 16 * 1024 * 1024, 96 * 1024 * 1024))


_VMEM_LIMIT = _vmem_limit_bytes()


def _pick_col_tile(padded_dim):
    """padded_dim is a multiple of 128; prefer 512, then 256, then 128."""
    for t in (_MAX_COL_TILE, 256, _LANE):
        if padded_dim % t == 0:
            return t
    return padded_dim


def _pick_k_tile(K):
    """Keep the contraction dim whole unless it is large and tileable."""
    if K <= 2048 or K % _LANE != 0:
        return K
    for c in (512, 256):
        if K % c == 0:
            return c
    return K


def _row_tiling(n):
    """Bucket row counts (bounded recompiles) and pick a dividing row tile.

    Small counts (tail clusters) bucket to pow-2 >= 8 (f32 sublane), not 128.
    """
    n_pad = max(8, int(pl.next_power_of_2(max(int(n), 1))))
    if n_pad <= _MAX_ROW_TILE:
        return n_pad, n_pad
    n_pad = _round_up(int(n), _MAX_ROW_TILE)
    return n_pad, _MAX_ROW_TILE


def _pad_rows_to(x, n_pad):
    N = x.shape[0]
    if n_pad != N:
        x = jnp.concatenate(
            [x, jnp.zeros((n_pad - N,) + x.shape[1:], x.dtype)], axis=0)
    return x


# ----------------------------- Pallas kernel -------------------------------

def _matmul_kernel(x_ref, w_ref, o_ref):
    # x: (tm, tk) f32, w: (tk, tn) bf16.  Output block is resident across the
    # K grid axis, so accumulate directly into it (f32) -- no scratch, no copy.
    @pl.when(pl.program_id(2) == 0)
    def _init():
        o_ref[...] = jnp.zeros_like(o_ref)

    o_ref[...] += jnp.dot(x_ref[...].astype(jnp.bfloat16), w_ref[...],
                          preferred_element_type=jnp.float32)


# ----------------------------- Kernel wrapper ------------------------------

def pallas_linear(x, w_t, *, keep_padded_rows=False):
    """x: (N, K) f32, w_t: (K, M) bf16 with M % 128 == 0 -> (N, M) f32."""
    N, K = x.shape
    Kw, M = w_t.shape
    assert K == Kw and M % _LANE == 0
    n_pad, tm = _row_tiling(N)
    x = _pad_rows_to(x, n_pad)

    tn = _pick_col_tile(M)
    tk = _pick_k_tile(K)
    grid = (n_pad // tm, M // tn, K // tk)

    out = pl.pallas_call(
        _matmul_kernel,
        out_shape=jax.ShapeDtypeStruct((n_pad, M), jnp.float32),
        grid_spec=pltpu.PrefetchScalarGridSpec(
            num_scalar_prefetch=0,
            grid=grid,
            in_specs=[
                pl.BlockSpec((tm, tk), lambda i, j, k: (i, k)),
                pl.BlockSpec((tk, tn), lambda i, j, k: (k, j)),
            ],
            out_specs=pl.BlockSpec((tm, tn), lambda i, j, k: (i, j)),
        ),
        compiler_params=pltpu.CompilerParams(
            dimension_semantics=("parallel", "parallel", "arbitrary"),
            vmem_limit_bytes=_VMEM_LIMIT,
        ),
    )(x, w_t)
    return out if keep_padded_rows else out[:N]


# --------------------------- Module construction ---------------------------

def xavier_uniform(key, out_dim, in_dim):
    a = math.sqrt(6.0 / (in_dim + out_dim))
    return jax.random.uniform(key, (out_dim, in_dim), jnp.float32, -a, a)


def _pad_last(w, multiple):
    pad = _round_up(w.shape[-1], multiple) - w.shape[-1]
    return jnp.pad(w, ((0, 0), (0, pad))) if pad else w


def _pad_first(w, multiple):
    pad = _round_up(w.shape[0], multiple) - w.shape[0]
    return jnp.pad(w, ((0, pad), (0, 0))) if pad else w


def make_adaptive_softmax_params(key, vocab_size, input_dim, cutoff):
    """Weights built in PyTorch (out, in) layout with xavier_uniform, then
    stored pre-transposed to (in, out), zero-padded on the output/hidden axes
    (head & tail outputs to 256 multiples, tail hidden to 128), and cast to
    bf16.  Padding is sliced off outside the kernels; matmuls accumulate f32.
    """
    if vocab_size > cutoff[-1]:
        cutoff = cutoff + [vocab_size]
    else:
        assert vocab_size == cutoff[-1]
    output_dim = cutoff[0] + len(cutoff) - 1

    keys = jax.random.split(key, 1 + 2 * (len(cutoff) - 1))
    head_w = xavier_uniform(keys[0], output_dim, input_dim)           # (out, in)
    params = {
        "head_t": _pad_last(head_w.T, _OUT_PAD).astype(jnp.bfloat16),  # (in, out_pad)
        "head_out": output_dim,
        "tail": [],                                                    # (w1_t, w2_t, M)
    }
    for i in range(len(cutoff) - 1):
        hid = input_dim // 4 ** (i + 1)        # _make_tail(fix_exponent=True)
        m = cutoff[i + 1] - cutoff[i]
        w1 = xavier_uniform(keys[1 + 2 * i], hid, input_dim)           # (H, in)
        w2 = xavier_uniform(keys[2 + 2 * i], m, hid)                   # (M, H)
        w1_t = _pad_last(w1.T, _LANE).astype(jnp.bfloat16)             # (in, H_pad)
        w2_t = _pad_last(_pad_first(w2.T, _LANE), _OUT_PAD)            # (H_pad, M_pad)
        params["tail"].append((w1_t, w2_t.astype(jnp.bfloat16), m))
    return params, cutoff


def adapt_target(target, cutoff):
    """Host-side replica of AdaptiveSoftmax.adapt_target (buggy_offset = 0)."""
    t = np.asarray(target).reshape(-1)
    head_t = t.copy()
    rest = []
    target_idxs = []
    for i in range(len(cutoff) - 1):
        mask = (t >= cutoff[i]) & (t < cutoff[i + 1])
        head_t[mask] = cutoff[0] + i
        if mask.any():
            target_idxs.append(np.nonzero(mask)[0])
            rest.append(t[mask] - cutoff[i])
        else:
            target_idxs.append(None)
            rest.append(None)
    return [head_t] + rest, target_idxs


def adaptive_softmax_forward(params, cutoff, x, target, dropout=0.0):
    """Forward pass. x: (b, t, d) f32, target: (b, t) int32."""
    # TODO(synk): training-mode stochastic dropout not implemented (p=0.0 -> identity).
    b, t, d = x.shape
    x2 = x.reshape(-1, d)

    # Dispatch the head matmul first so adapt_target's device->host sync on
    # `target` overlaps with the biggest kernel.
    head_full = pallas_linear(x2, params["head_t"])
    new_target, target_idxs = adapt_target(target, cutoff)

    head_out = head_full[:, :params["head_out"]].reshape(b, t, -1)
    outputs = [head_out]

    # Tail projections on rows whose targets fall into each cluster.
    # Stage 1 (tiny d -> d/4^(i+1)) and stage 2 (wide) are two plain tiled
    # matmuls; row counts are bucketed to pow-2 >= 8 inside pallas_linear.
    for i, idxs in enumerate(target_idxs):
        if idxs is None:
            outputs.append(None)
            continue
        w1_t, w2_t, m = params["tail"][i]
        n_i = len(idxs)
        # TODO(synk): fuse this row gather into the stage-1 kernel (scalar
        # prefetch + Element row map / manual DMA gather) to avoid the xi copy.
        xi = jnp.take(x2, jnp.asarray(idxs, dtype=jnp.int32), axis=0)
        hi = pallas_linear(xi, w1_t, keep_padded_rows=True)   # (n_pad, H_pad)
        oi = pallas_linear(hi, w2_t, keep_padded_rows=True)   # (n_pad, M_pad)
        outputs.append(oi[:n_i, :m])
    return outputs, new_target


# --------------------------------- Main ------------------------------------

if __name__ == "__main__":
    key = jax.random.PRNGKey(0)
    k_param, k_x, k_tgt = jax.random.split(key, 3)

    vocab_size = 64
    input_dim = 64
    cutoff_in = [16, 32]
    b, t = 2, 8

    params, cutoff = make_adaptive_softmax_params(
        k_param, vocab_size, input_dim, cutoff_in)

    x = jax.random.normal(k_x, (b, t, input_dim), jnp.float32)
    target = jax.random.randint(k_tgt, (b, t), 0, vocab_size, jnp.int32)

    outputs, new_target = adaptive_softmax_forward(params, cutoff, x, target)

    for o in outputs:
        if o is not None:
            jax.block_until_ready(o)

    # Sanity check against a plain-JAX reference of the same math (same bf16
    # weights, bf16-cast activations, f32 accumulate, padding sliced off).
    x2 = x.reshape(-1, input_dim)
    xb = x2.astype(jnp.bfloat16).astype(jnp.float32)

    head_w = params["head_t"].astype(jnp.float32)
    head_ref = (xb @ head_w)[:, :params["head_out"]].reshape(b, t, -1)
    np.testing.assert_allclose(np.asarray(outputs[0]), np.asarray(head_ref),
                               rtol=1e-2, atol=1e-2)

    _, target_idxs = adapt_target(target, cutoff)
    for i, idxs in enumerate(target_idxs):
        if idxs is None:
            assert outputs[i + 1] is None
            continue
        w1_t, w2_t, m = params["tail"][i]
        xi = xb[np.asarray(idxs)]
        hi = xi @ w1_t.astype(jnp.float32)
        hi = hi.astype(jnp.bfloat16).astype(jnp.float32)
        ref = (hi @ w2_t.astype(jnp.float32))[:, :m]
        assert outputs[i + 1].shape == ref.shape
        np.testing.assert_allclose(np.asarray(outputs[i + 1]), np.asarray(ref),
                                   rtol=1e-2, atol=1e-2)

    print("KERNEL_OK")
</pallas_src>

<mosaic_0001>
module attributes {stable_mosaic.version = 11 : i64} {
  func.func @_matmul_kernel(%arg0: i32, %arg1: i32, %arg2: i32, %arg3: memref<16x64xf32, #tpu.memory_space<vmem>>, %arg4: memref<64x256xbf16, #tpu.memory_space<vmem>>, %arg5: memref<16x256xf32, #tpu.memory_space<vmem>>) attributes {dimension_semantics = [#tpu.dimension_semantics<parallel>, #tpu.dimension_semantics<parallel>, #tpu.dimension_semantics<arbitrary>], iteration_bounds = array<i64: 1, 1, 1>, scalar_prefetch = 0 : i64, scratch_operands = 0 : i64, tpu.core_type = #tpu.core_type<tc>, window_params = [{transform_indices = @transform_0, window_bounds = array<i64: 16, 64>}, {transform_indices = @transform_1, window_bounds = array<i64: 64, 256>}, {transform_indices = @transform_2, window_bounds = array<i64: 16, 256>}]} {
    %c0_i32 = arith.constant 0 : i32
    %0 = arith.cmpi eq, %arg2, %c0_i32 : i32
    %1 = arith.extui %0 : i1 to i32
    %c0_i32_0 = arith.constant 0 : i32
    %2 = arith.cmpi ne, %1, %c0_i32_0 : i32
    scf.if %2 {
      %cst_8 = arith.constant 0.000000e+00 : f32
      %10 = vector.broadcast %cst_8 : f32 to vector<16x256xf32>
      %c0_9 = arith.constant 0 : index
      %c0_10 = arith.constant 0 : index
      %11 = vector.load %arg5[%c0_9, %c0_10] : memref<16x256xf32, #tpu.memory_space<vmem>>, vector<16x256xf32>
      tpu.vector_store %arg5[%c0_9, %c0_10], %10 {strides = array<i32>} : memref<16x256xf32, #tpu.memory_space<vmem>>, vector<16x256xf32>,
    } else {
    }
    %c0 = arith.constant 0 : index
    %c0_1 = arith.constant 0 : index
    %3 = vector.load %arg5[%c0, %c0_1] : memref<16x256xf32, #tpu.memory_space<vmem>>, vector<16x256xf32>
    %c0_2 = arith.constant 0 : index
    %c0_3 = arith.constant 0 : index
    %4 = vector.load %arg3[%c0_2, %c0_3] : memref<16x64xf32, #tpu.memory_space<vmem>>, vector<16x64xf32>
    %5 = arith.truncf %4 : vector<16x64xf32> to vector<16x64xbf16>
    %c0_4 = arith.constant 0 : index
    %c0_5 = arith.constant 0 : index
    %6 = vector.load %arg4[%c0_4, %c0_5] : memref<64x256xbf16, #tpu.memory_space<vmem>>, vector<64x256xbf16>
    %cst = arith.constant dense<0.000000e+00> : vector<16x256xf32>
    %7 = tpu.matmul %5, %6, %cst {dimension_numbers = #tpu.dot_dimension_numbers<[1], [0], [0], [1], [0, 0, 1, 1], [], []>} : vector<16x64xbf16>, vector<64x256xbf16>, vector<16x256xf32> -> vector<16x256xf32>
    %8 = arith.addf %3, %7 : vector<16x256xf32>
    %c0_6 = arith.constant 0 : index
    %c0_7 = arith.constant 0 : index
    %9 = vector.load %arg5[%c0_6, %c0_7] : memref<16x256xf32, #tpu.memory_space<vmem>>, vector<16x256xf32>
    tpu.vector_store %arg5[%c0_6, %c0_7], %8 {strides = array<i32>} : memref<16x256xf32, #tpu.memory_space<vmem>>, vector<16x256xf32>,
    return
  }
  func.func @transform_0(%arg0: i32, %arg1: i32, %arg2: i32) -> (i32, i32) {
    %c0_i32 = arith.constant 0 : i32
    return %arg0, %arg2 : i32, i32
  }
  func.func @transform_1(%arg0: i32, %arg1: i32, %arg2: i32) -> (i32, i32) {
    %c0_i32 = arith.constant 0 : i32
    return %arg2, %arg1 : i32, i32
  }
  func.func @transform_2(%arg0: i32, %arg1: i32, %arg2: i32) -> (i32, i32) {
    %c0_i32 = arith.constant 0 : i32
    return %arg0, %arg1 : i32, i32
  }
}

</mosaic_0001>

<llo_original>
// kernel: tpu_custom_call.1
$region0: #{tpu_custom_call.1}
  #allocation0 [shape = 'u32[]', space=smem, size = 0x4, offset = 0x4, fixed_abs, tag = 'smem constant byte address 0x4 - core index']
  #allocation1 [shape = 'u32[144,128]{1,0:T(1,128)}', space=vmem, size = 0x12000, scoped, tag = 'internal scratch']
  %s0 = inlined_call_operand.hbm [shape: f32[16,64], index: 0, kind: input, shape index: {}]
  %s1 = inlined_call_operand.hbm [shape: bf16[64,256], index: 1, kind: input, shape index: {}]
  %s2 = inlined_call_operand.hbm [shape: f32[16,256], index: 2, kind: output, shape index: {}]
  %s3 = sld [smem:[#allocation0]]
  $region30: #{tpu_custom_call.1} parent=0
    _
  %s5 = ssub.s32 1, %s3
  %s6 = scalar_select 0, %s5, %s3
  $region1: #{tpu_custom_call.1} parent=0
    #allocation2 [shape = 'u8[8192]{0}', space=vmem, size = 0x2000, scoped, tag = 'input window, operand 0, single buffered']
    #allocation3 [shape = 's32[1]{0}', space=sflag, size = 0x4, scoped, tag = 'scoped memory for tpu_custom_call.1']
    #allocation4 [shape = 's32[1]{0}', space=sflag, size = 0x4, scoped, tag = 'scoped memory for tpu_custom_call.1']
    #allocation5 [shape = 'u8[32768]{0}', space=vmem, size = 0x8000, scoped, tag = 'input window, operand 1, single buffered']
    #allocation6 [shape = 's32[1]{0}', space=sflag, size = 0x4, scoped, tag = 'scoped memory for tpu_custom_call.1']
    #allocation7 [shape = 'u8[16384]{0}', space=vmem, size = 0x4000, scoped, tag = 'output window, operand 0, single buffered']
    %7 = vsyncpa [#allocation3], 0
    %8 = vsyncpa [#allocation6], 0
    %9 = vsyncpa [#allocation4], 0
    // Predicated region
    $region2: #{tpu_custom_call.1} parent=1 // pred_check
      _
    $region3: #{tpu_custom_call.1} parent=1 // pred_check_branch
      %11 = sbr.rel (0) target = $region5
    $region4: #{tpu_custom_call.1} parent=1 // pred_region
      %s13 = ssub.s32 256, 256
      %14 = vsyncadd [#allocation3], %s13
      %s15 = sshll.u32 [#allocation2], 4
      %s16 = int_to_ptr.vmem [resolvable:$true] %s15
      %21 = dma.hbm_to_vmem [thread:$0]  %s0, 256, %s16, [#allocation3], 128, 128, 8
    $region5: #{tpu_custom_call.1} parent=1 // pred_fallthru
      _
    // Predicated region
    $region6: #{tpu_custom_call.1} parent=1 // pred_check
      _
    $region7: #{tpu_custom_call.1} parent=1 // pred_check_branch
      %23 = sbr.rel (0) target = $region9
    $region8: #{tpu_custom_call.1} parent=1 // pred_region
      %s25 = ssub.s32 1024, 1024
      %26 = vsyncadd [#allocation6], %s25
      %s27 = sshll.u32 [#allocation5], 4
      %s28 = int_to_ptr.vmem [resolvable:$true] %s27
      %33 = dma.hbm_to_vmem [thread:$0]  %s1, 1024, %s28, [#allocation6], 128, 128, 8
    $region9: #{tpu_custom_call.1} parent=1 // pred_fallthru
      _
    // Predicated region
    $region10: #{tpu_custom_call.1} parent=1 // pred_check
      _
    $region11: #{tpu_custom_call.1} parent=1 // pred_check_branch
      %35 = sbr.rel (0) target = $region13
    $region12: #{tpu_custom_call.1} parent=1 // pred_region
      %36 = dma.done [#allocation3], 256
    $region13: #{tpu_custom_call.1} parent=1 // pred_fallthru
      _
    // Predicated region
    $region14: #{tpu_custom_call.1} parent=1 // pred_check
      _
    $region15: #{tpu_custom_call.1} parent=1 // pred_check_branch
      %38 = sbr.rel (0) target = $region17
    $region16: #{tpu_custom_call.1} parent=1 // pred_region
      %39 = dma.done [#allocation6], 1024
    $region17: #{tpu_custom_call.1} parent=1 // pred_fallthru
      _
    %p41 = scmp.eq.s32.totalorder 0, 0
    // Predicated region
    $region18: #{tpu_custom_call.1} parent=1 // pred_check
      %p42 = pneg %p41
    $region19: #{tpu_custom_call.1} parent=1 // pred_check_branch
      %44 = sbr.rel (%p42) target = $region21
    $region20: #{tpu_custom_call.1} parent=1 // pred_region
      %45 = vst [vmem:[#allocation7] sm:$0xff] 0.0
      %46 = vst [vmem:[#allocation7 + $0x8] sm:$0xff] 0.0
      %47 = vst [vmem:[#allocation7 + $0x10] sm:$0xff] 0.0
      %48 = vst [vmem:[#allocation7 + $0x18] sm:$0xff] 0.0
    $region21: #{tpu_custom_call.1} parent=1 // pred_fallthru
      _
    %v49 = vld [vmem:[#allocation7] sm:$0xff]
    %v50 = vld [vmem:[#allocation7 + $0x8] sm:$0xff]
    %v51 = vld [vmem:[#allocation7 + $0x10] sm:$0xff]
    %v52 = vld [vmem:[#allocation7 + $0x18] sm:$0xff]
    %v53 = vld [vmem:[#allocation2] sm:$0xff]
    %v54 = vld [vmem:[#allocation2 + $0x8] sm:$0xff]
    %v55 = vpack.c.bf16 %v54, %v53
    %v56 = vld [vmem:[#allocation5] sm:$0xff]
    %v57 = vld [vmem:[#allocation5 + $0x8] sm:$0xff]
    %v58 = vld [vmem:[#allocation5 + $0x10] sm:$0xff]
    %v59 = vld [vmem:[#allocation5 + $0x18] sm:$0xff]
    %v60 = vld [vmem:[#allocation5 + $0x20] sm:$0xff]
    %v61 = vld [vmem:[#allocation5 + $0x28] sm:$0xff]
    %v62 = vld [vmem:[#allocation5 + $0x30] sm:$0xff]
    %v63 = vld [vmem:[#allocation5 + $0x38] sm:$0xff]
    %v72 = vunpack.c.l.b16 %v56
    %v73 = vunpack.c.h.b16 %v56
    %v74 = vunpack.c.l.b16 %v57
    %v75 = vunpack.c.h.b16 %v57
    %v76 = vunpack.c.l.b16 %v58
    %v77 = vunpack.c.h.b16 %v58
    %v78 = vunpack.c.l.b16 %v59
    %v79 = vunpack.c.h.b16 %v59
    %v80 = vunpack.c.l.b16 %v60
    %v81 = vunpack.c.h.b16 %v60
    %v82 = vunpack.c.l.b16 %v61
    %v83 = vunpack.c.h.b16 %v61
    %v84 = vunpack.c.l.b16 %v62
    %v85 = vunpack.c.h.b16 %v62
    %v86 = vunpack.c.l.b16 %v63
    %v87 = vunpack.c.h.b16 %v63
    %v88 = vpack.c.b16 %v74, %v72
    %v89 = vpack.c.b16 %v75, %v73
    %v90 = vpack.c.b16 %v78, %v76
    %v91 = vpack.c.b16 %v79, %v77
    %v92 = vpack.c.b16 %v82, %v80
    %v93 = vpack.c.b16 %v83, %v81
    %v94 = vpack.c.b16 %v86, %v84
    %v95 = vpack.c.b16 %v87, %v85
    %vm104 = vcmask 523264
    %v106 = vsel %vm104, %v55, 0
    %108 = vmatprep.subr.bf16.mxu0 %v89
    %109 = vmatpush1.bf16.msra.mxu0 %v88
    %110 = vmatprep.subr.bf16.mxu0 %v91
    %111 = vmatpush1.bf16.msra.mxu0 %v90
    %112 = vmatprep.subr.bf16.mxu0 %v93
    %113 = vmatpush1.bf16.msra.mxu0 %v92
    %114 = vmatprep.subr.bf16.mxu0 %v95
    %115 = vmatpush1.bf16.msra.mxu0 %v94
    %116 = vmatprep.subr.bf16.mxu0 0
    %117 = vmatpush1.bf16.msra.mxu0 0
    %118 = vmatprep.subr.bf16.mxu0 0
    %119 = vmatpush1.bf16.msra.mxu0 0
    %120 = vmatprep.subr.bf16.mxu0 0
    %121 = vmatpush1.bf16.msra.mxu0 0
    %122 = vmatprep.subr.bf16.mxu0 0
    %123 = vmatpush1.bf16.msra.mxu0 0
    %124 = vmatprep.subr.bf16.mxu0 0
    %125 = vmatpush1.bf16.msra.mxu0 0
    %126 = vmatprep.subr.bf16.mxu0 0
    %127 = vmatpush1.bf16.msra.mxu0 0
    %128 = vmatprep.subr.bf16.mxu0 0
    %129 = vmatpush1.bf16.msra.mxu0 0
    %130 = vmatprep.subr.bf16.mxu0 0
    %131 = vmatpush1.bf16.msra.mxu0 0
    %132 = vmatprep.subr.bf16.mxu0 0
    %133 = vmatpush1.bf16.msra.mxu0 0
    %134 = vmatprep.subr.bf16.mxu0 0
    %135 = vmatpush1.bf16.msra.mxu0 0
    %136 = vmatprep.subr.bf16.mxu0 0
    %137 = vmatpush1.bf16.msra.mxu0 0
    %138 = vmatprep.subr.bf16.mxu0 0
    %139 = vmatpush1.bf16.msra.mxu0 0
    %140 = vmatprep.mubr.bf16.mxu0 0
    %141 = vmatmul.mubr.bf16.gmra.mrb[0].mxu0 %v106
    %v142 = vpop.f32.mrb[0].mxu0
    %v143 = vadd.f32 0.0, %v142
    %v144 = vpop.f32.mrb[0].mxu0
    %v145 = vadd.f32 0.0, %v144
    %v146 = vpop.f32.mrb[0].mxu0
    %v147 = vadd.f32 0.0, %v146
    %v148 = vpop.f32.mrb[0].mxu0
    %v149 = vadd.f32 0.0, %v148
    %150 = vdwg.mxu0
    %v151 = vadd.f32 %v49, %v143
    %v152 = vadd.f32 %v50, %v145
    %v153 = vadd.f32 %v51, %v147
    %v154 = vadd.f32 %v52, %v149
    %155 = vst [vmem:[#allocation7] sm:$0xff] %v151
    %156 = vst [vmem:[#allocation7 + $0x8] sm:$0xff] %v152
    %157 = vst [vmem:[#allocation7 + $0x10] sm:$0xff] %v153
    %158 = vst [vmem:[#allocation7 + $0x18] sm:$0xff] %v154
    // Predicated region
    $region22: #{tpu_custom_call.1} parent=1 // pred_check
      _
    $region23: #{tpu_custom_call.1} parent=1 // pred_check_branch
      %160 = sbr.rel (0) target = $region25
    $region24: #{tpu_custom_call.1} parent=1 // pred_region
      %s162 = ssub.s32 512, 512
      %163 = vsyncadd [#allocation4], %s162
      %s164 = sshll.u32 [#allocation7], 4
      %s165 = int_to_ptr.vmem [resolvable:$true] %s164
      %170 = dma.vmem_to_hbm [thread:$0]  %s165, 512, %s2, [#allocation4], 256, 256, 16
    $region25: #{tpu_custom_call.1} parent=1 // pred_fallthru
      _
    // Predicated region
    $region26: #{tpu_custom_call.1} parent=1 // pred_check
      _
    $region27: #{tpu_custom_call.1} parent=1 // pred_check_branch
      %172 = sbr.rel (0) target = $region29
    $region28: #{tpu_custom_call.1} parent=1 // pred_region
      %173 = dma.done [#allocation4], 512
    $region29: #{tpu_custom_call.1} parent=1 // pred_fallthru
      _
    %174 = vsyncpa [#allocation3], 1
    %175 = vsyncpa [#allocation6], 1
    %176 = vsyncpa [#allocation4], 1

</llo_original>
